<compile_context>
chip_gen: v7x
topology: tpu7x:2x2x1
jax: 0.10.0
libtpu: 0.0.40
codegen_flags: <defaults>
</compile_context>

<pallas_src>
import jax
import jax.numpy as jnp
from jax.experimental import pallas as pl
from jax.experimental.pallas import tpu as pltpu

# Largest-first lane widths (all multiples of 128) tried for the pad-free path.
_LANE_CHOICES = (1024, 896, 768, 640, 512, 384, 256, 128)
# Sublane-safe multiple for tile rows (covers f32 / bf16 / int8 packing).
_SUBLANE = 32


def _round_up(x: int, m: int) -> int:
    return ((x + m - 1) // m) * m


def _device_tuning():
    """(target_block_bytes, min_grid_steps) chosen from the local TPU generation."""
    try:
        kind = jax.devices()[0].device_kind.lower()
    except Exception:  # no device info -> conservative defaults
        kind = ""
    is_v7 = ("v7" in kind) or ("7x" in kind)
    newer = is_v7 or ("v6" in kind)
    target_block_bytes = (4 if newer else 2) * 1024 * 1024  # 4 MiB v6e/v7x, 2 MiB v5e
    min_grid = 2 if is_v7 else 1  # v7x: 2 TensorCores -> want >= 2 parallel steps
    return target_block_bytes, min_grid


def _h_sigmoid_kernel(x_ref, o_ref):
    # relu6(x + 3) / 6  ==  clip(x + 3, 0, 6) / 6   (computed in f32, cast on store)
    x = x_ref[...].astype(jnp.float32)
    o_ref[...] = (jnp.clip(x + 3.0, 0.0, 6.0) / 6.0).astype(o_ref.dtype)


def h_sigmoid(x: jax.Array) -> jax.Array:
    """Elementwise hard-sigmoid: relu6(x + 3) / 6, matching PyTorch h_sigmoid."""
    orig_shape = x.shape
    dtype = x.dtype
    n = x.size
    if n == 0:
        return x
    itemsize = jnp.dtype(dtype).itemsize

    flat = x.reshape(-1)

    # Lane-dense 2-D view.  Prefer a lane width that divides n exactly so the
    # kernel is the ONLY HBM pass (no pad, no slice).
    lanes = next((L for L in _LANE_CHOICES if n % L == 0), 0)
    if lanes:
        rows = n // lanes
        tail = 0
    else:
        # n not a multiple of 128: padded fallback (costs an extra pad + slice,
        # only hit for small/awkward shapes).
        lanes = 1024
        rows = pl.cdiv(n, lanes)
        tail = rows * lanes - n
        flat = jnp.pad(flat, (0, tail))

    target_bytes, min_grid = _device_tuning()

    # Byte-targeted block: same ~MiB-scale block regardless of dtype.
    tile_rows = max(_SUBLANE, (target_bytes // (lanes * itemsize)) // _SUBLANE * _SUBLANE)
    # v7x: make sure big-enough arrays get >= 2 grid steps so both TCs work.
    if min_grid > 1 and rows > _SUBLANE and rows * lanes * itemsize >= 2 * 1024 * 1024:
        tile_rows = min(tile_rows, _round_up(pl.cdiv(rows, min_grid), _SUBLANE))
    if tile_rows >= rows:
        tile_rows = rows  # single full-extent block (always layout-legal)

    grid = (pl.cdiv(rows, tile_rows),)  # ragged last block handled by Pallas

    x2d = flat.reshape(rows, lanes)
    out2d = pl.pallas_call(
        _h_sigmoid_kernel,
        out_shape=jax.ShapeDtypeStruct((rows, lanes), dtype),
        grid=grid,
        in_specs=[pl.BlockSpec((tile_rows, lanes), lambda i: (i, 0))],
        out_specs=pl.BlockSpec((tile_rows, lanes), lambda i: (i, 0)),
        compiler_params=pltpu.CompilerParams(dimension_semantics=("parallel",)),
    )(x2d)

    if tail:
        # Padded tail of the last row is garbage; never expose it.
        return out2d.reshape(-1)[:n].reshape(orig_shape)
    return out2d.reshape(orig_shape)


if __name__ == "__main__":
    key = jax.random.PRNGKey(0)

    # NCHW input, small shape consistent with the conv-style module.
    # size = 2048 -> pad-free path (lanes=1024, rows=2, single block).
    x = jax.random.normal(key, (2, 4, 16, 16), dtype=jnp.float32) * 4.0
    y = jax.block_until_ready(h_sigmoid(x))
    y_ref = jnp.clip(x + 3.0, 0.0, 6.0) / 6.0
    assert y.shape == x.shape and y.dtype == x.dtype
    assert jnp.allclose(y, y_ref, atol=1e-6, rtol=1e-6)

    # Awkward (non-multiple-of-128) size -> exercises the padded fallback path.
    x2 = jax.random.normal(jax.random.PRNGKey(0), (3, 5, 7, 11), dtype=jnp.float32) * 4.0
    y2 = jax.block_until_ready(h_sigmoid(x2))
    y2_ref = jnp.clip(x2 + 3.0, 0.0, 6.0) / 6.0
    assert y2.shape == x2.shape and y2.dtype == x2.dtype
    assert jnp.allclose(y2, y2_ref, atol=1e-6, rtol=1e-6)

    # bf16 input: kernel computes in f32 and casts on store.
    x3 = (jax.random.normal(jax.random.PRNGKey(1), (2, 4, 16, 16), dtype=jnp.float32) * 4.0
          ).astype(jnp.bfloat16)
    y3 = jax.block_until_ready(h_sigmoid(x3))
    y3_ref = (jnp.clip(x3.astype(jnp.float32) + 3.0, 0.0, 6.0) / 6.0).astype(jnp.bfloat16)
    assert y3.shape == x3.shape and y3.dtype == x3.dtype
    assert jnp.allclose(y3.astype(jnp.float32), y3_ref.astype(jnp.float32),
                        atol=1e-2, rtol=1e-2)

    print("KERNEL_OK")
</pallas_src>

<mosaic_0001>
module attributes {stable_mosaic.version = 11 : i64} {
  func.func @_h_sigmoid_kernel(%arg0: i32, %arg1: memref<2x1024xf32, #tpu.memory_space<vmem>>, %arg2: memref<2x1024xf32, #tpu.memory_space<vmem>>) attributes {dimension_semantics = [#tpu.dimension_semantics<parallel>], iteration_bounds = array<i64: 1>, scalar_prefetch = 0 : i64, scratch_operands = 0 : i64, tpu.core_type = #tpu.core_type<tc>, window_params = [{transform_indices = @transform_0, window_bounds = array<i64: 2, 1024>}, {transform_indices = @transform_1, window_bounds = array<i64: 2, 1024>}]} {
    %c0 = arith.constant 0 : index
    %c0_0 = arith.constant 0 : index
    %0 = vector.load %arg1[%c0, %c0_0] : memref<2x1024xf32, #tpu.memory_space<vmem>>, vector<2x1024xf32>
    %cst = arith.constant 3.000000e+00 : f32
    %1 = vector.broadcast %cst : f32 to vector<2x1024xf32>
    %2 = arith.addf %0, %1 : vector<2x1024xf32>
    %cst_1 = arith.constant 0.000000e+00 : f32
    %cst_2 = arith.constant 6.000000e+00 : f32
    %3 = vector.broadcast %cst_1 : f32 to vector<2x1024xf32>
    %4 = arith.maximumf %3, %2 : vector<2x1024xf32>
    %5 = vector.broadcast %cst_2 : f32 to vector<2x1024xf32>
    %6 = arith.minimumf %5, %4 : vector<2x1024xf32>
    %cst_3 = arith.constant 6.000000e+00 : f32
    %7 = vector.broadcast %cst_3 : f32 to vector<2x1024xf32>
    %8 = arith.divf %6, %7 : vector<2x1024xf32>
    %c0_4 = arith.constant 0 : index
    %c0_5 = arith.constant 0 : index
    %9 = vector.load %arg2[%c0_4, %c0_5] : memref<2x1024xf32, #tpu.memory_space<vmem>>, vector<2x1024xf32>
    tpu.vector_store %arg2[%c0_4, %c0_5], %8 {strides = array<i32>} : memref<2x1024xf32, #tpu.memory_space<vmem>>, vector<2x1024xf32>,
    return
  }
  func.func @transform_0(%arg0: i32) -> (i32, i32) {
    %c0_i32 = arith.constant 0 : i32
    %c0_i32_0 = arith.constant 0 : i32
    return %arg0, %c0_i32 : i32, i32
  }
  func.func @transform_1(%arg0: i32) -> (i32, i32) {
    %c0_i32 = arith.constant 0 : i32
    %c0_i32_0 = arith.constant 0 : i32
    return %arg0, %c0_i32 : i32, i32
  }
}

</mosaic_0001>

<llo_original>
// kernel: tpu_custom_call.1
$region0: #{tpu_custom_call.1}
  #allocation0 [shape = 'u32[]', space=smem, size = 0x4, offset = 0x4, fixed_abs, tag = 'smem constant byte address 0x4 - core index']
  #allocation1 [shape = 'u32[144,128]{1,0:T(1,128)}', space=vmem, size = 0x12000, scoped, tag = 'internal scratch']
  %s0 = inlined_call_operand.hbm [shape: f32[2,1024], index: 0, kind: input, shape index: {}]
  %s1 = inlined_call_operand.hbm [shape: f32[2,1024], index: 1, kind: output, shape index: {}]
  %s2 = sld [smem:[#allocation0]]
  $region18: #{tpu_custom_call.1} parent=0
    _
  %s4 = ssub.s32 1, %s2
  %s5 = scalar_select 0, %s4, %s2
  $region1: #{tpu_custom_call.1} parent=0
    #allocation2 [shape = 'u8[8192]{0}', space=vmem, size = 0x2000, scoped, tag = 'input window, operand 0, single buffered']
    #allocation3 [shape = 's32[1]{0}', space=sflag, size = 0x4, scoped, tag = 'scoped memory for tpu_custom_call.1']
    #allocation4 [shape = 's32[1]{0}', space=sflag, size = 0x4, scoped, tag = 'scoped memory for tpu_custom_call.1']
    #allocation5 [shape = 'u8[8192]{0}', space=vmem, size = 0x2000, scoped, tag = 'output window, operand 0, single buffered']
    %6 = vsyncpa [#allocation3], 0
    %7 = vsyncpa [#allocation4], 0
    // Predicated region
    $region2: #{tpu_custom_call.1} parent=1 // pred_check
      _
    $region3: #{tpu_custom_call.1} parent=1 // pred_check_branch
      %9 = sbr.rel (0) target = $region5
    $region4: #{tpu_custom_call.1} parent=1 // pred_region
      %s11 = ssub.s32 256, 256
      %12 = vsyncadd [#allocation3], %s11
      %s14 = sshll.u32 [#allocation2], 4
      %s15 = int_to_ptr.vmem [resolvable:$true] %s14
      %17 = dma.hbm_to_vmem [thread:$0]  %s0, 256, %s15, [#allocation3]
    $region5: #{tpu_custom_call.1} parent=1 // pred_fallthru
      _
    // Predicated region
    $region6: #{tpu_custom_call.1} parent=1 // pred_check
      _
    $region7: #{tpu_custom_call.1} parent=1 // pred_check_branch
      %19 = sbr.rel (0) target = $region9
    $region8: #{tpu_custom_call.1} parent=1 // pred_region
      %20 = dma.done [#allocation3], 256
    $region9: #{tpu_custom_call.1} parent=1 // pred_fallthru
      _
    %v21 = vld [vmem:[#allocation2] sm:$0xff]
    %v22 = vld [vmem:[#allocation2 + $0x8] sm:$0xff]
    %v23 = vadd.f32 %v21, 3.0
    %v24 = vadd.f32 %v22, 3.0
    %v25 = vmax.f32 %v23, 0.0
    %v26 = vmax.f32 %v24, 0.0
    %v27 = vmin.f32 %v25, 6.0
    %v28 = vmin.f32 %v26, 6.0
    %v29 = vrcp.pop 6.0
    %v30 = vmul.f32 %v27, %v29
    %v31 = vmul.f32 %v28, %v29
    %32 = vst [vmem:[#allocation5] sm:$0xff] %v30
    %33 = vst [vmem:[#allocation5 + $0x8] sm:$0xff] %v31
    // Predicated region
    $region10: #{tpu_custom_call.1} parent=1 // pred_check
      _
    $region11: #{tpu_custom_call.1} parent=1 // pred_check_branch
      %35 = sbr.rel (0) target = $region13
    $region12: #{tpu_custom_call.1} parent=1 // pred_region
      %s37 = ssub.s32 256, 256
      %38 = vsyncadd [#allocation4], %s37
      %s40 = sshll.u32 [#allocation5], 4
      %s41 = int_to_ptr.vmem [resolvable:$true] %s40
      %43 = dma.vmem_to_hbm [thread:$0]  %s41, 256, %s1, [#allocation4]
    $region13: #{tpu_custom_call.1} parent=1 // pred_fallthru
      _
    // Predicated region
    $region14: #{tpu_custom_call.1} parent=1 // pred_check
      _
    $region15: #{tpu_custom_call.1} parent=1 // pred_check_branch
      %45 = sbr.rel (0) target = $region17
    $region16: #{tpu_custom_call.1} parent=1 // pred_region
      %46 = dma.done [#allocation4], 256
    $region17: #{tpu_custom_call.1} parent=1 // pred_fallthru
      _
    %47 = vsyncpa [#allocation3], 1
    %48 = vsyncpa [#allocation4], 1

</llo_original>
